<compile_context>
chip_gen: v7x
topology: tpu7x:2x2x1
jax: 0.10.0
libtpu: 0.0.40
codegen_flags: <defaults>
</compile_context>

<pallas_src>
import functools

import jax
import jax.numpy as jnp
from jax import lax
from jax.experimental import pallas as pl
from jax.experimental.pallas import tpu as pltpu

NEG_INF = -1e30
LANE = 128
SUBLANE = 8
MAX_ROW_TILE = 256


def _round_up(a, b):
    return (a + b - 1) // b * b


# --------------------------- GATConv layer kernel --------------------------- #

def _gat_layer_kernel(x_full_ref, x_rows_ref, mask_ref, w_ref, attn_ref, o_ref,
                      *, negative_slope: float, apply_relu: bool):
    # Stacked per-layer vectors: row 0 = a_src, row 1 = a_dst, row 2 = bias.
    attn = attn_ref[...]                                               # [3, C]
    a_src = attn[0:1, :]
    a_dst = attn[1:2, :]
    bias = attn[2:3, :]

    w = w_ref[...]                                                     # [F, C]
    # Full projection: every row tile needs h for all source nodes j.
    h_full = jnp.dot(x_full_ref[...], w,
                     preferred_element_type=jnp.float32)               # [N, C]
    # Projection of this tile's query rows (cheap recompute; avoids a dynamic
    # sublane slice of h_full).
    h_rows = jnp.dot(x_rows_ref[...], w,
                     preferred_element_type=jnp.float32)               # [tq, C]

    # alpha_dst[i] = h[i] . a_dst   (VPU mul + small XLU reduce, tile rows only)
    alpha_dst = jnp.sum(h_rows * a_dst, axis=-1, keepdims=True)        # [tq, 1]
    # alpha_src[j] = h[j] . a_src   as a lane row; contract on the feature dim
    # directly on the MXU (no transpose of h_full).
    alpha_src = lax.dot_general(
        a_src, h_full, dimension_numbers=(((1,), (1,)), ((), ())),
        preferred_element_type=jnp.float32)                            # [1, N]

    e = alpha_dst + alpha_src                                          # [tq, N]
    e = jnp.maximum(e, negative_slope * e)                             # LeakyReLU
    # int8 {0,1} mask -> -1e30 on non-edges (in-kernel select, VPU).
    mask = mask_ref[...].astype(jnp.float32)                           # [tq, N]
    e = jnp.where(mask > 0.0, e, NEG_INF)

    m = jnp.max(e, axis=-1, keepdims=True)                             # [tq, 1]
    p = jnp.exp(e - m)                                                 # [tq, N]

    # Deferred softmax normalization: aggregate un-normalized p on the MXU and
    # get the denominator from the same matmul via a ones column on h.
    n_full = h_full.shape[0]
    c = h_full.shape[1]
    h_ext = jnp.concatenate(
        [h_full, jnp.ones((n_full, 1), jnp.float32)], axis=-1)         # [N, C+1]
    acc_ext = jnp.dot(p, h_ext, preferred_element_type=jnp.float32)    # [tq, C+1]
    acc = acc_ext[:, :c]                                               # [tq, C]
    denom = acc_ext[:, c:c + 1]                                        # [tq, 1]

    out = acc * pl.reciprocal(denom, approx=True) + bias               # EUP vrcp
    if apply_relu:
        out = jnp.maximum(out, 0.0)
    o_ref[...] = out


def _layer_vmem_bytes(tq, n_pad, fin, fout):
    b = 0
    b += 2 * tq * n_pad                       # int8 mask tile (double buffered)
    b += 2 * tq * fin * 4                     # x row tile
    b += 2 * n_pad * fin * 4                  # x full (grid-invariant)
    b += 2 * (fin * fout + 8 * fout) * 4      # W + stacked [a_src;a_dst;bias]
    b += 2 * tq * fout * 4                    # output tile
    b += n_pad * (fout + LANE) * 4            # h_full / h_ext values
    b += 3 * tq * n_pad * 4                   # e / p temporaries + headroom
    b += 4 << 20
    return int(min(b, 100 << 20))


def _gat_conv(x, mask_i8, attn, w, *, tq, apply_relu, negative_slope=0.2):
    n_pad, fin = x.shape
    fout = w.shape[1]
    grid = (n_pad // tq,)

    kernel = functools.partial(_gat_layer_kernel,
                               negative_slope=negative_slope,
                               apply_relu=apply_relu)

    return pl.pallas_call(
        kernel,
        out_shape=jax.ShapeDtypeStruct((n_pad, fout), jnp.float32),
        grid=grid,
        in_specs=[
            pl.BlockSpec((n_pad, fin), lambda i: (0, 0)),   # x (full, resident)
            pl.BlockSpec((tq, fin), lambda i: (i, 0)),      # x (query-row tile)
            pl.BlockSpec((tq, n_pad), lambda i: (i, 0)),    # int8 mask row tile
            pl.BlockSpec((fin, fout), lambda i: (0, 0)),    # W
            pl.BlockSpec((3, fout), lambda i: (0, 0)),      # [a_src; a_dst; bias]
        ],
        out_specs=pl.BlockSpec((tq, fout), lambda i: (i, 0)),
        compiler_params=pltpu.CompilerParams(
            dimension_semantics=("parallel",),      # v7x: rows split across TCs
            vmem_limit_bytes=_layer_vmem_bytes(tq, n_pad, fin, fout)),
    )(x, x, mask_i8, w, attn)


# ------------------------ global_mean_pool + Linear ------------------------- #

def _pool_linear_kernel(pool_ref, h_ref, wl_ref, bl_ref, o_ref):
    pooled = jnp.dot(pool_ref[...], h_ref[...],
                     preferred_element_type=jnp.float32)               # [G, C]
    # TODO(synk): F.dropout(p=0.5) is identity in eval mode; no RNG applied.
    o_ref[...] = jnp.dot(pooled, wl_ref[...],
                         preferred_element_type=jnp.float32) + bl_ref[...]


def _pool_linear(pool_mat, h, wl, bl):
    g, n_pad = pool_mat.shape
    hid = h.shape[1]
    k_pad = wl.shape[1]
    return pl.pallas_call(
        _pool_linear_kernel,
        out_shape=jax.ShapeDtypeStruct((g, k_pad), jnp.float32),
        grid=(1,),
        in_specs=[
            pl.BlockSpec((g, n_pad), lambda i: (0, 0)),
            pl.BlockSpec((n_pad, hid), lambda i: (0, 0)),
            pl.BlockSpec((hid, k_pad), lambda i: (0, 0)),
            pl.BlockSpec((1, k_pad), lambda i: (0, 0)),
        ],
        out_specs=pl.BlockSpec((g, k_pad), lambda i: (0, 0)),
        compiler_params=pltpu.CompilerParams(
            dimension_semantics=("arbitrary",)),
    )(pool_mat, h, wl, bl)


# ------------------------------ Forward wrapper ----------------------------- #

def gat_forward(x, adj, pool_mat, params):
    n, fin = x.shape
    hid = params["conv1"]["W"].shape[1]
    g = pool_mat.shape[0]
    k = params["lin"]["W"].shape[1]

    # Row-tile size and node padding (tq attention rows per grid step).
    if n <= MAX_ROW_TILE:
        tq = _round_up(n, SUBLANE)
        n_pad = tq
    else:
        tq = MAX_ROW_TILE
        n_pad = _round_up(n, tq)

    # Pad nodes with zero features / zero mask rows+cols / zero pool columns.
    # Padded rows get an all-zero mask row -> finite garbage (never NaN) that
    # the zero pool columns discard.
    x_pad = jnp.zeros((n_pad, fin), jnp.float32).at[:n, :].set(x)
    mask_i8 = jnp.zeros((n_pad, n_pad), jnp.int8).at[:n, :n].set(
        (adj > 0).astype(jnp.int8))
    pool_pad = jnp.zeros((g, n_pad), jnp.float32).at[:, :n].set(pool_mat)

    # Stack tiny per-layer vectors into a single [3, hid] operand per layer.
    def stack(p):
        return jnp.concatenate([p["a_src"], p["a_dst"], p["bias"]], axis=0)

    # Lane-dense classifier (pad K -> multiple of 128; sliced back below).
    k_pad = pl.cdiv(k, LANE) * LANE
    wl = jnp.zeros((hid, k_pad), jnp.float32).at[:, :k].set(params["lin"]["W"])
    bl = jnp.zeros((1, k_pad), jnp.float32).at[:, :k].set(params["lin"]["b"])

    c1, c2, c3 = params["conv1"], params["conv2"], params["conv3"]
    h = _gat_conv(x_pad, mask_i8, stack(c1), c1["W"], tq=tq, apply_relu=True)
    h = _gat_conv(h, mask_i8, stack(c2), c2["W"], tq=tq, apply_relu=True)
    h = _gat_conv(h, mask_i8, stack(c3), c3["W"], tq=tq, apply_relu=False)
    out = _pool_linear(pool_pad, h, wl, bl)
    return out[:, :k]


# ----------------------- Reference (pure JAX, for checking) ----------------- #

def _ref_gat_conv(x, p, adj, apply_relu):
    h = x @ p["W"]
    ad = jnp.sum(h * p["a_dst"], axis=-1, keepdims=True)
    asr = jnp.sum(h * p["a_src"], axis=-1)[None, :]
    e = ad + asr
    e = jnp.where(e > 0, e, 0.2 * e)
    e = jnp.where(adj > 0, e, NEG_INF)
    att = jax.nn.softmax(e, axis=-1)
    out = att @ h + p["bias"]
    return jnp.maximum(out, 0.0) if apply_relu else out


def gat_forward_ref(x, adj, pool_mat, params):
    h = _ref_gat_conv(x, params["conv1"], adj, True)
    h = _ref_gat_conv(h, params["conv2"], adj, True)
    h = _ref_gat_conv(h, params["conv3"], adj, False)
    pooled = pool_mat @ h
    return pooled @ params["lin"]["W"] + params["lin"]["b"]


# ---------------------------------- Setup ----------------------------------- #

def init_params(key, input_size, hidden, num_classes=3):
    def glorot(k, shape):
        lim = jnp.sqrt(6.0 / (shape[0] + shape[1]))
        return jax.random.uniform(k, shape, jnp.float32, -lim, lim)

    ks = jax.random.split(key, 12)
    params = {}
    dims = [(input_size, hidden), (hidden, hidden), (hidden, hidden)]
    for li, (fi, fo) in enumerate(dims):
        params[f"conv{li + 1}"] = dict(
            W=glorot(ks[3 * li + 0], (fi, fo)),
            a_src=glorot(ks[3 * li + 1], (1, fo)),
            a_dst=glorot(ks[3 * li + 2], (1, fo)),
            bias=jnp.zeros((1, fo), jnp.float32),
        )
    params["lin"] = dict(
        W=glorot(ks[9], (hidden, num_classes)),
        b=jnp.zeros((1, num_classes), jnp.float32),
    )
    return params


def build_adjacency(src, dst, num_nodes):
    adj = jnp.zeros((num_nodes, num_nodes), jnp.float32)
    adj = adj.at[dst, src].set(1.0)                       # edge j -> i
    idx = jnp.arange(num_nodes)
    adj = adj.at[idx, idx].set(1.0)                       # add_self_loops=True
    return adj


def build_pool_matrix(batch, num_graphs):
    onehot = (jnp.arange(num_graphs)[:, None] == batch[None, :]).astype(jnp.float32)
    counts = jnp.sum(onehot, axis=1, keepdims=True)
    return onehot / jnp.maximum(counts, 1.0)


if __name__ == "__main__":
    # Small deterministic problem: 4 graphs x 8 nodes, ring topology per graph.
    num_graphs, nodes_per_graph = 4, 8
    N = num_graphs * nodes_per_graph          # 32 nodes
    input_size, hidden = 16, 32

    key = jax.random.PRNGKey(0)
    kx, kp = jax.random.split(key)
    x = jax.random.normal(kx, (N, input_size), jnp.float32)
    params = init_params(kp, input_size, hidden)

    # ring edges (both directions) within each graph
    src_list, dst_list = [], []
    for g in range(num_graphs):
        base = g * nodes_per_graph
        for n in range(nodes_per_graph):
            a = base + n
            b = base + (n + 1) % nodes_per_graph
            src_list += [a, b]
            dst_list += [b, a]
    src = jnp.array(src_list, jnp.int32)
    dst = jnp.array(dst_list, jnp.int32)
    batch = jnp.repeat(jnp.arange(num_graphs, dtype=jnp.int32), nodes_per_graph)

    adj = build_adjacency(src, dst, N)
    pool_mat = build_pool_matrix(batch, num_graphs)

    out = gat_forward(x, adj, pool_mat, params)
    out = jax.block_until_ready(out)

    ref = gat_forward_ref(x, adj, pool_mat, params)
    assert out.shape == (num_graphs, 3)
    assert jnp.allclose(out, ref, rtol=2e-3, atol=2e-3), "mismatch vs JAX reference"

    print("KERNEL_OK")
</pallas_src>

<mosaic_0001>
module attributes {stable_mosaic.version = 11 : i64} {
  func.func @_gat_layer_kernel(%arg0: i32, %arg1: memref<32x16xf32, #tpu.memory_space<vmem>>, %arg2: memref<32x16xf32, #tpu.memory_space<vmem>>, %arg3: memref<32x32xi8, #tpu.memory_space<vmem>>, %arg4: memref<16x32xf32, #tpu.memory_space<vmem>>, %arg5: memref<3x32xf32, #tpu.memory_space<vmem>>, %arg6: memref<32x32xf32, #tpu.memory_space<vmem>>) attributes {dimension_semantics = [#tpu.dimension_semantics<parallel>], iteration_bounds = array<i64: 1>, scalar_prefetch = 0 : i64, scratch_operands = 0 : i64, tpu.core_type = #tpu.core_type<tc>, window_params = [{pipeline_mode = #tpu.pipeline_mode<synchronous>, transform_indices = @transform_0, window_bounds = array<i64: 32, 16>}, {transform_indices = @transform_1, window_bounds = array<i64: 32, 16>}, {transform_indices = @transform_2, window_bounds = array<i64: 32, 32>}, {pipeline_mode = #tpu.pipeline_mode<synchronous>, transform_indices = @transform_3, window_bounds = array<i64: 16, 32>}, {pipeline_mode = #tpu.pipeline_mode<synchronous>, transform_indices = @transform_4, window_bounds = array<i64: 3, 32>}, {transform_indices = @transform_5, window_bounds = array<i64: 32, 32>}]} {
    %c0 = arith.constant 0 : index
    %c0_0 = arith.constant 0 : index
    %0 = vector.load %arg5[%c0, %c0_0] : memref<3x32xf32, #tpu.memory_space<vmem>>, vector<3x32xf32>
    %1 = vector.extract_strided_slice %0 {offsets = [0, 0], sizes = [1, 32], strides = [1, 1]} : vector<3x32xf32> to vector<1x32xf32>
    %2 = vector.extract_strided_slice %0 {offsets = [1, 0], sizes = [1, 32], strides = [1, 1]} : vector<3x32xf32> to vector<1x32xf32>
    %3 = vector.extract_strided_slice %0 {offsets = [2, 0], sizes = [1, 32], strides = [1, 1]} : vector<3x32xf32> to vector<1x32xf32>
    %c0_1 = arith.constant 0 : index
    %c0_2 = arith.constant 0 : index
    %4 = vector.load %arg4[%c0_1, %c0_2] : memref<16x32xf32, #tpu.memory_space<vmem>>, vector<16x32xf32>
    %c0_3 = arith.constant 0 : index
    %c0_4 = arith.constant 0 : index
    %5 = vector.load %arg1[%c0_3, %c0_4] : memref<32x16xf32, #tpu.memory_space<vmem>>, vector<32x16xf32>
    %cst = arith.constant dense<0.000000e+00> : vector<32x32xf32>
    %6 = tpu.matmul %5, %4, %cst {dimension_numbers = #tpu.dot_dimension_numbers<[1], [0], [0], [1], [0, 0, 1, 1], [], []>} : vector<32x16xf32>, vector<16x32xf32>, vector<32x32xf32> -> vector<32x32xf32>
    %c0_5 = arith.constant 0 : index
    %c0_6 = arith.constant 0 : index
    %7 = vector.load %arg2[%c0_5, %c0_6] : memref<32x16xf32, #tpu.memory_space<vmem>>, vector<32x16xf32>
    %cst_7 = arith.constant dense<0.000000e+00> : vector<32x32xf32>
    %8 = tpu.matmul %7, %4, %cst_7 {dimension_numbers = #tpu.dot_dimension_numbers<[1], [0], [0], [1], [0, 0, 1, 1], [], []>} : vector<32x16xf32>, vector<16x32xf32>, vector<32x32xf32> -> vector<32x32xf32>
    %9 = vector.broadcast %2 : vector<1x32xf32> to vector<32x32xf32>
    %10 = arith.mulf %8, %9 : vector<32x32xf32>
    %cst_8 = arith.constant dense<0.000000e+00> : vector<32xf32>
    %11 = vector.multi_reduction <add>, %10, %cst_8 [1] : vector<32x32xf32> to vector<32xf32>
    %12 = vector.shape_cast %11 : vector<32xf32> to vector<32x1xf32>
    %cst_9 = arith.constant dense<0.000000e+00> : vector<1x32xf32>
    %13 = tpu.matmul %1, %6, %cst_9 {dimension_numbers = #tpu.dot_dimension_numbers<[1], [1], [0], [0], [0, 0, 1, 0], [], []>} : vector<1x32xf32>, vector<32x32xf32>, vector<1x32xf32> -> vector<1x32xf32>
    %14 = vector.broadcast %12 : vector<32x1xf32> to vector<32x32xf32>
    %15 = vector.broadcast %13 : vector<1x32xf32> to vector<32x32xf32>
    %16 = arith.addf %14, %15 : vector<32x32xf32>
    %cst_10 = arith.constant 2.000000e-01 : f32
    %17 = vector.broadcast %cst_10 : f32 to vector<32x32xf32>
    %18 = arith.mulf %17, %16 : vector<32x32xf32>
    %19 = arith.maximumf %16, %18 : vector<32x32xf32>
    %c0_11 = arith.constant 0 : index
    %c0_12 = arith.constant 0 : index
    %20 = vector.load %arg3[%c0_11, %c0_12] : memref<32x32xi8, #tpu.memory_space<vmem>>, vector<32x32xi8>
    %21 = arith.sitofp %20 : vector<32x32xi8> to vector<32x32xf32>
    %cst_13 = arith.constant 0.000000e+00 : f32
    %22 = vector.broadcast %cst_13 : f32 to vector<32x32xf32>
    %23 = arith.cmpf ogt, %21, %22 : vector<32x32xf32>
    %cst_14 = arith.constant -1.000000e+30 : f32
    %24 = vector.broadcast %cst_14 : f32 to vector<32x32xf32>
    %25 = arith.select %23, %19, %24 : vector<32x32xi1>, vector<32x32xf32>
    %cst_15 = arith.constant dense<0xFF800000> : vector<32xf32>
    %26 = vector.multi_reduction <maximumf>, %25, %cst_15 [1] : vector<32x32xf32> to vector<32xf32>
    %27 = vector.shape_cast %26 : vector<32xf32> to vector<32x1xf32>
    %28 = vector.broadcast %27 : vector<32x1xf32> to vector<32x32xf32>
    %29 = arith.subf %25, %28 : vector<32x32xf32>
    %30 = math.exp %29 : vector<32x32xf32>
    %cst_16 = arith.constant 1.000000e+00 : f32
    %31 = vector.broadcast %cst_16 : f32 to vector<32x1xf32>
    %32 = tpu.concatenate %6, %31 in 1 : vector<32x32xf32>, vector<32x1xf32> -> vector<32x33xf32>
    %cst_17 = arith.constant dense<0.000000e+00> : vector<32x33xf32>
    %33 = tpu.matmul %30, %32, %cst_17 {dimension_numbers = #tpu.dot_dimension_numbers<[1], [0], [0], [1], [0, 0, 1, 1], [], []>} : vector<32x32xf32>, vector<32x33xf32>, vector<32x33xf32> -> vector<32x33xf32>
    %34 = vector.extract_strided_slice %33 {offsets = [0, 0], sizes = [32, 32], strides = [1, 1]} : vector<32x33xf32> to vector<32x32xf32>
    %35 = vector.extract_strided_slice %33 {offsets = [0, 32], sizes = [32, 1], strides = [1, 1]} : vector<32x33xf32> to vector<32x1xf32>
    %36 = tpu.reciprocal %35 {approx = true} : vector<32x1xf32> -> vector<32x1xf32>
    %37 = vector.broadcast %36 : vector<32x1xf32> to vector<32x32xf32>
    %38 = arith.mulf %34, %37 : vector<32x32xf32>
    %39 = vector.broadcast %3 : vector<1x32xf32> to vector<32x32xf32>
    %40 = arith.addf %38, %39 : vector<32x32xf32>
    %cst_18 = arith.constant 0.000000e+00 : f32
    %41 = vector.broadcast %cst_18 : f32 to vector<32x32xf32>
    %42 = arith.maximumf %40, %41 : vector<32x32xf32>
    %c0_19 = arith.constant 0 : index
    %c0_20 = arith.constant 0 : index
    %43 = vector.load %arg6[%c0_19, %c0_20] : memref<32x32xf32, #tpu.memory_space<vmem>>, vector<32x32xf32>
    tpu.vector_store %arg6[%c0_19, %c0_20], %42 {strides = array<i32>} : memref<32x32xf32, #tpu.memory_space<vmem>>, vector<32x32xf32>,
    return
  }
  func.func @transform_0(%arg0: i32) -> (i32, i32) {
    %c0_i32 = arith.constant 0 : i32
    %c0_i32_0 = arith.constant 0 : i32
    %c0_i32_1 = arith.constant 0 : i32
    return %c0_i32, %c0_i32_0 : i32, i32
  }
  func.func @transform_1(%arg0: i32) -> (i32, i32) {
    %c0_i32 = arith.constant 0 : i32
    %c0_i32_0 = arith.constant 0 : i32
    return %arg0, %c0_i32 : i32, i32
  }
  func.func @transform_2(%arg0: i32) -> (i32, i32) {
    %c0_i32 = arith.constant 0 : i32
    %c0_i32_0 = arith.constant 0 : i32
    return %arg0, %c0_i32 : i32, i32
  }
  func.func @transform_3(%arg0: i32) -> (i32, i32) {
    %c0_i32 = arith.constant 0 : i32
    %c0_i32_0 = arith.constant 0 : i32
    %c0_i32_1 = arith.constant 0 : i32
    return %c0_i32, %c0_i32_0 : i32, i32
  }
  func.func @transform_4(%arg0: i32) -> (i32, i32) {
    %c0_i32 = arith.constant 0 : i32
    %c0_i32_0 = arith.constant 0 : i32
    %c0_i32_1 = arith.constant 0 : i32
    return %c0_i32, %c0_i32_0 : i32, i32
  }
  func.func @transform_5(%arg0: i32) -> (i32, i32) {
    %c0_i32 = arith.constant 0 : i32
    %c0_i32_0 = arith.constant 0 : i32
    return %arg0, %c0_i32 : i32, i32
  }
}

</mosaic_0001>

<llo_original>
// kernel: tpu_custom_call.1
$region0: #{tpu_custom_call.1}
  #allocation0 [shape = 'u32[]', space=smem, size = 0x4, offset = 0x4, fixed_abs, tag = 'smem constant byte address 0x4 - core index']
  #allocation1 [shape = 'u32[144,128]{1,0:T(1,128)}', space=vmem, size = 0x12000, scoped, tag = 'internal scratch']
  %s0 = inlined_call_operand.vmem [shape: f32[32,16], index: 0, kind: input, shape index: {}]
  %s1 = inlined_call_operand.vmem [shape: f32[32,16], index: 1, kind: input, shape index: {}]
  %s2 = inlined_call_operand.vmem [shape: s8[32,32], index: 2, kind: input, shape index: {}]
  %s3 = inlined_call_operand.vmem [shape: f32[16,32], index: 3, kind: input, shape index: {}]
  %s4 = inlined_call_operand.vmem [shape: f32[3,32], index: 4, kind: input, shape index: {}]
  %s5 = inlined_call_operand.hbm [shape: f32[32,32], index: 5, kind: output, shape index: {}]
  %s6 = sld [smem:[#allocation0]]
  $region30: #{tpu_custom_call.1} parent=0
    _
  %s8 = ssub.s32 1, %s6
  %s9 = scalar_select 0, %s8, %s6
  $region1: #{tpu_custom_call.1} parent=0
    #allocation2 [shape = 'u8[16384]{0}', space=vmem, size = 0x4000, scoped, tag = 'output window, operand 0, single buffered']
    #allocation3 [shape = 's32[1]{0}', space=sflag, size = 0x4, scoped, tag = 'scoped memory for tpu_custom_call.1']
    %10 = vsyncpa [#allocation3], 0
    // Predicated region
    $region2: #{tpu_custom_call.1} parent=1 // pred_check
      _
    $region3: #{tpu_custom_call.1} parent=1 // pred_check_branch
      %12 = sbr.rel (0) target = $region5
    $region4: #{tpu_custom_call.1} parent=1 // pred_region
      _
    $region5: #{tpu_custom_call.1} parent=1 // pred_fallthru
      _
    // Predicated region
    $region6: #{tpu_custom_call.1} parent=1 // pred_check
      _
    $region7: #{tpu_custom_call.1} parent=1 // pred_check_branch
      %14 = sbr.rel (0) target = $region9
    $region8: #{tpu_custom_call.1} parent=1 // pred_region
      _
    $region9: #{tpu_custom_call.1} parent=1 // pred_fallthru
      _
    // Predicated region
    $region10: #{tpu_custom_call.1} parent=1 // pred_check
      _
    $region11: #{tpu_custom_call.1} parent=1 // pred_check_branch
      %16 = sbr.rel (0) target = $region13
    $region12: #{tpu_custom_call.1} parent=1 // pred_region
      _
    $region13: #{tpu_custom_call.1} parent=1 // pred_fallthru
      _
    // Predicated region
    $region14: #{tpu_custom_call.1} parent=1 // pred_check
      _
    $region15: #{tpu_custom_call.1} parent=1 // pred_check_branch
      %18 = sbr.rel (0) target = $region17
    $region16: #{tpu_custom_call.1} parent=1 // pred_region
      _
    $region17: #{tpu_custom_call.1} parent=1 // pred_fallthru
      _
    // Predicated region
    $region18: #{tpu_custom_call.1} parent=1 // pred_check
      _
    $region19: #{tpu_custom_call.1} parent=1 // pred_check_branch
      %20 = sbr.rel (0) target = $region21
    $region20: #{tpu_custom_call.1} parent=1 // pred_region
      _
    $region21: #{tpu_custom_call.1} parent=1 // pred_fallthru
      _
    %v21 = vld [vmem:[%s4] sm:$0x7]
    %v22 = vld [vmem:[%s3] sm:$0xff]
    %v23 = vld [vmem:[%s3 + $0x8] sm:$0xff]
    %v24 = vld [vmem:[%s0] sm:$0xff]
    %v25 = vld [vmem:[%s0 + $0x8] sm:$0xff]
    %v26 = vld [vmem:[%s0 + $0x10] sm:$0xff]
    %v27 = vld [vmem:[%s0 + $0x18] sm:$0xff]
    %vm28 = vcmask 130048
    %v30 = vsel %vm28, %v24, 0
    %v33 = vsel %vm28, %v25, 0
    %v36 = vsel %vm28, %v26, 0
    %v39 = vsel %vm28, %v27, 0
    %41 = vmatprep.subr.mxu0 0.0
    %42 = vmatpush1.msra.mxu0 %v22
    %43 = vmatprep.subr.mxu0 0.0
    %44 = vmatpush1.msra.mxu0 %v23
    %45 = vmatprep.subr.mxu0 0.0
    %46 = vmatpush1.msra.mxu0 0.0
    %47 = vmatprep.subr.mxu0 0.0
    %48 = vmatpush1.msra.mxu0 0.0
    %49 = vmatprep.subr.mxu0 0.0
    %50 = vmatpush1.msra.mxu0 0.0
    %51 = vmatprep.subr.mxu0 0.0
    %52 = vmatpush1.msra.mxu0 0.0
    %53 = vmatprep.subr.mxu0 0.0
    %54 = vmatpush1.msra.mxu0 0.0
    %55 = vmatprep.subr.mxu0 0.0
    %56 = vmatpush1.msra.mxu0 0.0
    %57 = vmatprep.subr.mxu0 0.0
    %58 = vmatpush1.msra.mxu0 0.0
    %59 = vmatprep.subr.mxu0 0.0
    %60 = vmatpush1.msra.mxu0 0.0
    %61 = vmatprep.subr.mxu0 0.0
    %62 = vmatpush1.msra.mxu0 0.0
    %63 = vmatprep.subr.mxu0 0.0
    %64 = vmatpush1.msra.mxu0 0.0
    %65 = vmatprep.subr.mxu0 0.0
    %66 = vmatpush1.msra.mxu0 0.0
    %67 = vmatprep.subr.mxu0 0.0
    %68 = vmatpush1.msra.mxu0 0.0
    %69 = vmatprep.subr.mxu0 0.0
    %70 = vmatpush1.msra.mxu0 0.0
    %71 = vmatprep.subr.mxu0 0.0
    %72 = vmatpush1.msra.mxu0 0.0
    %73 = vmatprep.subr.mxu0 0.0
    %74 = vmatpush1.msra.mxu0 0.0
    %75 = vmatprep.subr.mxu0 0.0
    %76 = vmatpush1.msra.mxu0 0.0
    %77 = vmatprep.subr.mxu0 0.0
    %78 = vmatpush1.msra.mxu0 0.0
    %79 = vmatprep.subr.mxu0 0.0
    %80 = vmatpush1.msra.mxu0 0.0
    %81 = vmatprep.subr.mxu0 0.0
    %82 = vmatpush1.msra.mxu0 0.0
    %83 = vmatprep.subr.mxu0 0.0
    %84 = vmatpush1.msra.mxu0 0.0
    %85 = vmatprep.subr.mxu0 0.0
    %86 = vmatpush1.msra.mxu0 0.0
    %87 = vmatprep.subr.mxu0 0.0
    %88 = vmatpush1.msra.mxu0 0.0
    %89 = vmatprep.subr.mxu0 0.0
    %90 = vmatpush1.msra.mxu0 0.0
    %91 = vmatprep.subr.mxu0 0.0
    %92 = vmatpush1.msra.mxu0 0.0
    %93 = vmatprep.subr.mxu0 0.0
    %94 = vmatpush1.msra.mxu0 0.0
    %95 = vmatprep.subr.mxu0 0.0
    %96 = vmatpush1.msra.mxu0 0.0
    %97 = vmatprep.subr.mxu0 0.0
    %98 = vmatpush1.msra.mxu0 0.0
    %99 = vmatprep.subr.mxu0 0.0
    %100 = vmatpush1.msra.mxu0 0.0
    %101 = vmatprep.subr.mxu0 0.0
    %102 = vmatpush1.msra.mxu0 0.0
    %103 = vmatprep.subr.mxu0 0.0
    %104 = vmatpush1.msra.mxu0 0.0
    %105 = vmatprep.mubr.f32.mxu0 0.0
    %106 = vmatmul.mubr.f32.gmra.mrb[0].mxu0 %v30
    %v107 = vpop.f32.mrb[0].mxu0
    %v108 = vadd.f32 0.0, %v107
    %v109 = vpop.f32.mrb[0].mxu0
    %110 = vmatprep.mubr.f32.mxu0 0.0
    %111 = vmatmul.mubr.f32.gmra.mrb[0].mxu0 %v33
    %v112 = vpop.f32.mrb[0].mxu0
    %v113 = vadd.f32 0.0, %v112
    %v114 = vpop.f32.mrb[0].mxu0
    %115 = vmatprep.mubr.f32.mxu0 0.0
    %116 = vmatmul.mubr.f32.gmra.mrb[0].mxu0 %v36
    %v117 = vpop.f32.mrb[0].mxu0
    %v118 = vadd.f32 0.0, %v117
    %v119 = vpop.f32.mrb[0].mxu0
    %120 = vmatprep.mubr.f32.mxu0 0.0
    %121 = vmatmul.mubr.f32.gmra.mrb[0].mxu0 %v39
    %v122 = vpop.f32.mrb[0].mxu0
    %v123 = vadd.f32 0.0, %v122
    %v124 = vpop.f32.mrb[0].mxu0
    %125 = vdwg.mxu0
    %v126 = vld [vmem:[%s1] sm:$0xff]
    %v127 = vld [vmem:[%s1 + $0x8] sm:$0xff]
    %v128 = vld [vmem:[%s1 + $0x10] sm:$0xff]
    %v129 = vld [vmem:[%s1 + $0x18] sm:$0xff]
    %v131 = vsel %vm28, %v126, 0
    %v134 = vsel %vm28, %v127, 0
    %v137 = vsel %vm28, %v128, 0
    %v140 = vsel %vm28, %v129, 0
    %142 = vmatprep.subr.mxu0 0.0
    %143 = vmatpush1.msra.mxu0 %v22
    %144 = vmatprep.subr.mxu0 0.0
    %145 = vmatpush1.msra.mxu0 %v23
    %146 = vmatprep.subr.mxu0 0.0
    %147 = vmatpush1.msra.mxu0 0.0
    %148 = vmatprep.subr.mxu0 0.0
    %149 = vmatpush1.msra.mxu0 0.0
    %150 = vmatprep.subr.mxu0 0.0
    %151 = vmatpush1.msra.mxu0 0.0
    %152 = vmatprep.subr.mxu0 0.0
    %153 = vmatpush1.msra.mxu0 0.0
    %154 = vmatprep.subr.mxu0 0.0
    %155 = vmatpush1.msra.mxu0 0.0
    %156 = vmatprep.subr.mxu0 0.0
    %157 = vmatpush1.msra.mxu0 0.0
    %158 = vmatprep.subr.mxu0 0.0
    %159 = vmatpush1.msra.mxu0 0.0
    %160 = vmatprep.subr.mxu0 0.0
    %161 = vmatpush1.msra.mxu0 0.0
    %162 = vmatprep.subr.mxu0 0.0
    %163 = vmatpush1.msra.mxu0 0.0
    %164 = vmatprep.subr.mxu0 0.0
    %165 = vmatpush1.msra.mxu0 0.0
    %166 = vmatprep.subr.mxu0 0.0
    %167 = vmatpush1.msra.mxu0 0.0
    %168 = vmatprep.subr.mxu0 0.0
    %169 = vmatpush1.msra.mxu0 0.0
    %170 = vmatprep.subr.mxu0 0.0
    %171 = vmatpush1.msra.mxu0 0.0
    %172 = vmatprep.subr.mxu0 0.0
    %173 = vmatpush1.msra.mxu0 0.0
    %174 = vmatprep.subr.mxu0 0.0
    %175 = vmatpush1.msra.mxu0 0.0
    %176 = vmatprep.subr.mxu0 0.0
    %177 = vmatpush1.msra.mxu0 0.0
    %178 = vmatprep.subr.mxu0 0.0
    %179 = vmatpush1.msra.mxu0 0.0
    %180 = vmatprep.subr.mxu0 0.0
    %181 = vmatpush1.msra.mxu0 0.0
    %182 = vmatprep.subr.mxu0 0.0
    %183 = vmatpush1.msra.mxu0 0.0
    %184 = vmatprep.subr.mxu0 0.0
    %185 = vmatpush1.msra.mxu0 0.0
    %186 = vmatprep.subr.mxu0 0.0
    %187 = vmatpush1.msra.mxu0 0.0
    %188 = vmatprep.subr.mxu0 0.0
    %189 = vmatpush1.msra.mxu0 0.0
    %190 = vmatprep.subr.mxu0 0.0
    %191 = vmatpush1.msra.mxu0 0.0
    %192 = vmatprep.subr.mxu0 0.0
    %193 = vmatpush1.msra.mxu0 0.0
    %194 = vmatprep.subr.mxu0 0.0
    %195 = vmatpush1.msra.mxu0 0.0
    %196 = vmatprep.subr.mxu0 0.0
    %197 = vmatpush1.msra.mxu0 0.0
    %198 = vmatprep.subr.mxu0 0.0
    %199 = vmatpush1.msra.mxu0 0.0
    %200 = vmatprep.subr.mxu0 0.0
    %201 = vmatpush1.msra.mxu0 0.0
    %202 = vmatprep.subr.mxu0 0.0
    %203 = vmatpush1.msra.mxu0 0.0
    %204 = vmatprep.subr.mxu0 0.0
    %205 = vmatpush1.msra.mxu0 0.0
    %206 = vmatprep.mubr.f32.mxu0 0.0
    %207 = vmatmul.mubr.f32.gmra.mrb[0].mxu0 %v131
    %v208 = vpop.f32.mrb[0].mxu0
    %v209 = vadd.f32 0.0, %v208
    %v210 = vpop.f32.mrb[0].mxu0
    %211 = vmatprep.mubr.f32.mxu0 0.0
    %212 = vmatmul.mubr.f32.gmra.mrb[0].mxu0 %v134
    %v213 = vpop.f32.mrb[0].mxu0
    %v214 = vadd.f32 0.0, %v213
    %v215 = vpop.f32.mrb[0].mxu0
    %216 = vmatprep.mubr.f32.mxu0 0.0
    %217 = vmatmul.mubr.f32.gmra.mrb[0].mxu0 %v137
    %v218 = vpop.f32.mrb[0].mxu0
    %v219 = vadd.f32 0.0, %v218
    %v220 = vpop.f32.mrb[0].mxu0
    %221 = vmatprep.mubr.f32.mxu0 0.0
    %222 = vmatmul.mubr.f32.gmra.mrb[0].mxu0 %v140
    %v223 = vpop.f32.mrb[0].mxu0
    %v224 = vadd.f32 0.0, %v223
    %v225 = vpop.f32.mrb[0].mxu0
    %226 = vdwg.mxu0
    %v227 = vlaneseq
    %v228 = vshrl.u32 %v227, 7
    %v229 = vsub.s32 1, %v228
    %v230 = vrot.slane %v21, %v229
    %v231 = vmul.f32 %v209, %v230
    %v232 = vmul.f32 %v214, %v230
    %v233 = vmul.f32 %v219, %v230
    %v234 = vmul.f32 %v224, %v230
    %vm235 = vcmask 261120
    %v236 = vsel %vm235, %v231, 0.0
    %237 = vadd.xlane.f32.xlu0 %v236
    %v238 = vpop.xlane.xlu0 %237
    %v239 = vsel %vm235, %v232, 0.0
    %240 = vadd.xlane.f32.xlu0 %v239
    %v241 = vpop.xlane.xlu0 %240
    %v242 = vsel %vm235, %v233, 0.0
    %243 = vadd.xlane.f32.xlu0 %v242
    %v244 = vpop.xlane.xlu0 %243
    %v245 = vsel %vm235, %v234, 0.0
    %246 = vadd.xlane.f32.xlu0 %v245
    %v247 = vpop.xlane.xlu0 %246
    %v249 = vsel %vm235, %v21, 0
    %v252 = vsel %vm235, %v108, 0
    %v255 = vsel %vm235, %v113, 0
    %v258 = vsel %vm235, %v118, 0
    %v261 = vsel %vm235, %v123, 0
    %263 = vmatprep.subr.mxu0 0.0
    %264 = vmatpush1.xpose.msra.mxu0 %v252
    %265 = vmatprep.subr.mxu0 0.0
    %266 = vmatpush1.xpose.msra.mxu0 %v255
    %267 = vmatprep.subr.mxu0 0.0
    %268 = vmatpush1.xpose.msra.mxu0 %v258
    %269 = vmatprep.subr.mxu0 0.0
    %270 = vmatpush1.xpose.msra.mxu0 %v261
    %271 = vmatprep.subr.mxu0 0.0
    %272 = vmatpush1.xpose.msra.mxu0 0.0
    %273 = vmatprep.subr.mxu0 0.0
    %274 = vmatpush1.xpose.msra.mxu0 0.0
    %275 = vmatprep.subr.mxu0 0.0
    %276 = vmatpush1.xpose.msra.mxu0 0.0
    %277 = vmatprep.subr.mxu0 0.0
    %278 = vmatpush1.xpose.msra.mxu0 0.0
    %279 = vmatprep.subr.mxu0 0.0
    %280 = vmatpush1.xpose.msra.mxu0 0.0
    %281 = vmatprep.subr.mxu0 0.0
    %282 = vmatpush1.xpose.msra.mxu0 0.0
    %283 = vmatprep.subr.mxu0 0.0
    %284 = vmatpush1.xpose.msra.mxu0 0.0
    %285 = vmatprep.subr.mxu0 0.0
    %286 = vmatpush1.xpose.msra.mxu0 0.0
    %287 = vmatprep.subr.mxu0 0.0
    %288 = vmatpush1.xpose.msra.mxu0 0.0
    %289 = vmatprep.subr.mxu0 0.0
    %290 = vmatpush1.xpose.msra.mxu0 0.0
    %291 = vmatprep.subr.mxu0 0.0
    %292 = vmatpush1.xpose.msra.mxu0 0.0
    %293 = vmatprep.subr.mxu0 0.0
    %294 = vmatpush1.xpose.msra.mxu0 0.0
    %295 = vmatprep.subr.mxu0 0.0
    %296 = vmatpush1.xpose.msra.mxu0 0.0
    %297 = vmatprep.subr.mxu0 0.0
    %298 = vmatpush1.xpose.msra.mxu0 0.0
    %299 = vmatprep.subr.mxu0 0.0
    %300 = vmatpush1.xpose.msra.mxu0 0.0
    %301 = vmatprep.subr.mxu0 0.0
    %302 = vmatpush1.xpose.msra.mxu0 0.0
    %303 = vmatprep.subr.mxu0 0.0
    %304 = vmatpush1.xpose.msra.mxu0 0.0
    %305 = vmatprep.subr.mxu0 0.0
    %306 = vmatpush1.xpose.msra.mxu0 0.0
    %307 = vmatprep.subr.mxu0 0.0
    %308 = vmatpush1.xpose.msra.mxu0 0.0
    %309 = vmatprep.subr.mxu0 0.0
    %310 = vmatpush1.xpose.msra.mxu0 0.0
    %311 = vmatprep.subr.mxu0 0.0
    %312 = vmatpush1.xpose.msra.mxu0 0.0
    %313 = vmatprep.subr.mxu0 0.0
    %314 = vmatpush1.xpose.msra.mxu0 0.0
    %315 = vmatprep.subr.mxu0 0.0
    %316 = vmatpush1.xpose.msra.mxu0 0.0
    %317 = vmatprep.subr.mxu0 0.0
    %318 = vmatpush1.xpose.msra.mxu0 0.0
    %319 = vmatprep.subr.mxu0 0.0
    %320 = vmatpush1.xpose.msra.mxu0 0.0
    %321 = vmatprep.subr.mxu0 0.0
    %322 = vmatpush1.xpose.msra.mxu0 0.0
    %323 = vmatprep.subr.mxu0 0.0
    %324 = vmatpush1.xpose.msra.mxu0 0.0
    %325 = vmatprep.subr.mxu0 0.0
    %326 = vmatpush1.xpose.msra.mxu0 0.0
    %327 = vmatprep.mubr.f32.mxu0 0.0
    %328 = vmatmul.mubr.f32.gmra.mrb[0].mxu0 %v249
    %v329 = vpop.f32.mrb[0].mxu0
    %v330 = vadd.f32 0.0, %v329
    %v331 = vpop.f32.mrb[0].mxu0
    %332 = vdwg.mxu0
    %v333 = vlaneseq
    %v334 = vshrl.u32 %v333, 7
    %v335 = vsub.s32 0, %v334
    %v336 = vrot.slane %v330, %v335
    %v337 = vadd.f32 %v238, %v336
    %v338 = vadd.f32 %v241, %v336
    %v339 = vadd.f32 %v244, %v336
    %v340 = vadd.f32 %v247, %v336
    %v341 = vmul.f32 %v337, 0.2
    %v342 = vmul.f32 %v338, 0.2
    %v343 = vmul.f32 %v339, 0.2
    %v344 = vmul.f32 %v340, 0.2
    %v345 = vmax.f32 %v337, %v341
    %v346 = vmax.f32 %v338, %v342
    %v347 = vmax.f32 %v339, %v343
    %v348 = vmax.f32 %v340, %v344
    %v349 = vld [vmem:[%s2] sm:$0xff]
    %v350 = vunpack.c.0.s8 %v349
    %v351 = vunpack.c.1.s8 %v349
    %v352 = vunpack.c.2.s8 %v349
    %v353 = vunpack.c.3.s8 %v349
    %v354 = vcvt.s32.f32 %v350
    %v355 = vcvt.s32.f32 %v351
    %v356 = vcvt.s32.f32 %v352
    %v357 = vcvt.s32.f32 %v353
    %vm358 = vcmp.gt.f32.partialorder %v354, 0.0
    %vm359 = vcmp.gt.f32.partialorder %v355, 0.0
    %vm360 = vcmp.gt.f32.partialorder %v356, 0.0
    %vm361 = vcmp.gt.f32.partialorder %v357, 0.0
    %v362 = vsel %vm358, %v345, -1e+30
    %v363 = vsel %vm359, %v346, -1e+30
    %v364 = vsel %vm360, %v347, -1e+30
    %v365 = vsel %vm361, %v348, -1e+30
    %v366 = vsel %vm235, %v362, -inf
    %367 = vmax.xlane.f32.xlu0 %v366
    %v368 = vpop.xlane.xlu0 %367
    %v369 = vsel %vm235, %v363, -inf
    %370 = vmax.xlane.f32.xlu0 %v369
    %v371 = vpop.xlane.xlu0 %370
    %v372 = vsel %vm235, %v364, -inf
    %373 = vmax.xlane.f32.xlu0 %v372
    %v374 = vpop.xlane.xlu0 %373
    %v375 = vsel %vm235, %v365, -inf
    %376 = vmax.xlane.f32.xlu0 %v375
    %v377 = vpop.xlane.xlu0 %376
    %v378 = vsub.f32 %v362, %v368
    %v379 = vsub.f32 %v363, %v371
    %v380 = vsub.f32 %v364, %v374
    %v381 = vsub.f32 %v365, %v377
    %v382 = vmul.f32 %v378, 1.442695
    %v383 = vpow.pop %v382
    %v384 = vmul.f32 %v379, 1.442695
    %v385 = vpow.pop %v384
    %v386 = vmul.f32 %v380, 1.442695
    %v387 = vpow.pop %v386
    %v388 = vmul.f32 %v381, 1.442695
    %v389 = vpow.pop %v388
    %v390 = vsel %vm235, %v108, 1.0
    %v391 = vsel %vm235, %v113, 1.0
    %v392 = vsel %vm235, %v118, 1.0
    %v393 = vsel %vm235, %v123, 1.0
    %v395 = vsel %vm235, %v383, 0
    %v398 = vsel %vm235, %v385, 0
    %v401 = vsel %vm235, %v387, 0
    %v404 = vsel %vm235, %v389, 0
    %406 = vmatprep.subr.mxu0 0.0
    %407 = vmatpush1.msra.mxu0 %v390
    %408 = vmatprep.subr.mxu0 0.0
    %409 = vmatpush1.msra.mxu0 %v391
    %410 = vmatprep.subr.mxu0 0.0
    %411 = vmatpush1.msra.mxu0 %v392
    %412 = vmatprep.subr.mxu0 0.0
    %413 = vmatpush1.msra.mxu0 %v393
    %414 = vmatprep.subr.mxu0 0.0
    %415 = vmatpush1.msra.mxu0 0.0
    %416 = vmatprep.subr.mxu0 0.0
    %417 = vmatpush1.msra.mxu0 0.0
    %418 = vmatprep.subr.mxu0 0.0
    %419 = vmatpush1.msra.mxu0 0.0
    %420 = vmatprep.subr.mxu0 0.0
    %421 = vmatpush1.msra.mxu0 0.0
    %422 = vmatprep.subr.mxu0 0.0
    %423 = vmatpush1.msra.mxu0 0.0
    %424 = vmatprep.subr.mxu0 0.0
    %425 = vmatpush1.msra.mxu0 0.0
    %426 = vmatprep.subr.mxu0 0.0
    %427 = vmatpush1.msra.mxu0 0.0
    %428 = vmatprep.subr.mxu0 0.0
    %429 = vmatpush1.msra.mxu0 0.0
    %430 = vmatprep.subr.mxu0 0.0
    %431 = vmatpush1.msra.mxu0 0.0
    %432 = vmatprep.subr.mxu0 0.0
    %433 = vmatpush1.msra.mxu0 0.0
    %434 = vmatprep.subr.mxu0 0.0
    %435 = vmatpush1.msra.mxu0 0.0
    %436 = vmatprep.subr.mxu0 0.0
    %437 = vmatpush1.msra.mxu0 0.0
    %438 = vmatprep.subr.mxu0 0.0
    %439 = vmatpush1.msra.mxu0 0.0
    %440 = vmatprep.subr.mxu0 0.0
    %441 = vmatpush1.msra.mxu0 0.0
    %442 = vmatprep.subr.mxu0 0.0
    %443 = vmatpush1.msra.mxu0 0.0
    %444 = vmatprep.subr.mxu0 0.0
    %445 = vmatpush1.msra.mxu0 0.0
    %446 = vmatprep.subr.mxu0 0.0
    %447 = vmatpush1.msra.mxu0 0.0
    %448 = vmatprep.subr.mxu0 0.0
    %449 = vmatpush1.msra.mxu0 0.0
    %450 = vmatprep.subr.mxu0 0.0
    %451 = vmatpush1.msra.mxu0 0.0
    %452 = vmatprep.subr.mxu0 0.0
    %453 = vmatpush1.msra.mxu0 0.0
    %454 = vmatprep.subr.mxu0 0.0
    %455 = vmatpush1.msra.mxu0 0.0
    %456 = vmatprep.subr.mxu0 0.0
    %457 = vmatpush1.msra.mxu0 0.0
    %458 = vmatprep.subr.mxu0 0.0
    %459 = vmatpush1.msra.mxu0 0.0
    %460 = vmatprep.subr.mxu0 0.0
    %461 = vmatpush1.msra.mxu0 0.0
    %462 = vmatprep.subr.mxu0 0.0
    %463 = vmatpush1.msra.mxu0 0.0
    %464 = vmatprep.subr.mxu0 0.0
    %465 = vmatpush1.msra.mxu0 0.0
    %466 = vmatprep.subr.mxu0 0.0
    %467 = vmatpush1.msra.mxu0 0.0
    %468 = vmatprep.subr.mxu0 0.0
    %469 = vmatpush1.msra.mxu0 0.0
    %470 = vmatprep.mubr.f32.mxu0 0.0
    %471 = vmatmul.mubr.f32.gmra.mrb[0].mxu0 %v395
    %v472 = vpop.f32.mrb[0].mxu0
    %v473 = vadd.f32 0.0, %v472
    %v474 = vpop.f32.mrb[0].mxu0
    %475 = vmatprep.mubr.f32.mxu0 0.0
    %476 = vmatmul.mubr.f32.gmra.mrb[0].mxu0 %v398
    %v477 = vpop.f32.mrb[0].mxu0
    %v478 = vadd.f32 0.0, %v477
    %v479 = vpop.f32.mrb[0].mxu0
    %480 = vmatprep.mubr.f32.mxu0 0.0
    %481 = vmatmul.mubr.f32.gmra.mrb[0].mxu0 %v401
    %v482 = vpop.f32.mrb[0].mxu0
    %v483 = vadd.f32 0.0, %v482
    %v484 = vpop.f32.mrb[0].mxu0
    %485 = vmatprep.mubr.f32.mxu0 0.0
    %486 = vmatmul.mubr.f32.gmra.mrb[0].mxu0 %v404
    %v487 = vpop.f32.mrb[0].mxu0
    %v488 = vadd.f32 0.0, %v487
    %v489 = vpop.f32.mrb[0].mxu0
    %490 = vdwg.mxu0
    %v491 = vrcp.pop %v473
    %v492 = vrcp.pop %v478
    %v493 = vrcp.pop %v483
    %v494 = vrcp.pop %v488
    %496 = vset.pattern.permute.xlu0 32
    %497 = vperm.xlu0 %496, %v491
    %v498 = vpop.permute.xlu0 %497
    %501 = vset.pattern.permute.xlu0 32
    %502 = vperm.xlu0 %501, %v492
    %v503 = vpop.permute.xlu0 %502
    %506 = vset.pattern.permute.xlu0 32
    %507 = vperm.xlu0 %506, %v493
    %v508 = vpop.permute.xlu0 %507
    %511 = vset.pattern.permute.xlu0 32
    %512 = vperm.xlu0 %511, %v494
    %v513 = vpop.permute.xlu0 %512
    %v515 = vmul.f32 %v473, %v498
    %v516 = vmul.f32 %v478, %v503
    %v517 = vmul.f32 %v483, %v508
    %v518 = vmul.f32 %v488, %v513
    %v519 = vlaneseq
    %v520 = vshrl.u32 %v519, 7
    %v521 = vsub.s32 2, %v520
    %v522 = vrot.slane %v21, %v521
    %v523 = vadd.f32 %v515, %v522
    %v524 = vadd.f32 %v516, %v522
    %v525 = vadd.f32 %v517, %v522
    %v526 = vadd.f32 %v518, %v522
    %v527 = vmax.f32 %v523, 0.0
    %v528 = vmax.f32 %v524, 0.0
    %v529 = vmax.f32 %v525, 0.0
    %v530 = vmax.f32 %v526, 0.0
    %531 = vst.msk [vmem:[#allocation2] sm:$0xff] %vm235, %v527
    %532 = vst.msk [vmem:[#allocation2 + $0x8] sm:$0xff] %vm235, %v528
    %533 = vst.msk [vmem:[#allocation2 + $0x10] sm:$0xff] %vm235, %v529
    %534 = vst.msk [vmem:[#allocation2 + $0x18] sm:$0xff] %vm235, %v530
    // Predicated region
    $region22: #{tpu_custom_call.1} parent=1 // pred_check
      _
    $region23: #{tpu_custom_call.1} parent=1 // pred_check_branch
      %536 = sbr.rel (0) target = $region25
    $region24: #{tpu_custom_call.1} parent=1 // pred_region
      %s538 = ssub.s32 512, 512
      %539 = vsyncadd [#allocation3], %s538
      %s540 = sshll.u32 [#allocation2], 4
      %s541 = int_to_ptr.vmem [resolvable:$true] %s540
      %546 = dma.vmem_to_hbm [thread:$0]  %s541, 512, %s5, [#allocation3], 128, 128, 8
    $region25: #{tpu_custom_call.1} parent=1 // pred_fallthru
      _
    // Predicated region
    $region26: #{tpu_custom_call.1} parent=1 // pred_check
      _
    $region27: #{tpu_custom_call.1} parent=1 // pred_check_branch
      %548 = sbr.rel (0) target = $region29
    $region28: #{tpu_custom_call.1} parent=1 // pred_region
      %549 = dma.done [#allocation3], 512
    $region29: #{tpu_custom_call.1} parent=1 // pred_fallthru
      _
    %550 = vsyncpa [#allocation3], 1

</llo_original>
